<compile_context>
chip_gen: v7x
topology: tpu7x:2x2x1
jax: 0.10.0
libtpu: 0.0.40
codegen_flags: <defaults>
</compile_context>

<pallas_src>
import jax
import jax.numpy as jnp
from jax.experimental import pallas as pl
from jax.experimental.pallas import tpu as pltpu


def rnn_kernel(x_ref, wih_ref, whhT_ref, b_ref, out_ref, ihb_scr):
    """Single-invocation Elman RNN forward.

    x_ref   : (T, B, 1)   f32
    wih_ref : (1, Hp)     f32   W_ih as a row, zero-padded to Hp lanes
    whhT_ref: (Hp, Hp)    f32   W_hh^T, zero-padded
    b_ref   : (1, Hp)     f32   b_ih + b_hh, zero-padded
    out_ref : (T, B, Hp)  f32
    ihb_scr : (T, B, Hp)  f32   VMEM scratch holding the hoisted input projection
    """
    T, B, Hp = out_ref.shape

    # Hoist input projection + bias off the serial critical path:
    # (T,B,1) * (1,Hp) + (1,Hp) -> (T,B,Hp), computed once for all timesteps
    # (input_size == 1, so x_t @ W_ih^T is an outer product -> broadcast mul).
    ihb_scr[...] = x_ref[...] * wih_ref[...] + b_ref[...]

    whhT = whhT_ref[...]  # (Hp, Hp), resident for the whole recurrence

    def step(t, h):
        hh = jnp.dot(h, whhT, preferred_element_type=jnp.float32)  # (B, Hp)
        h_new = jnp.tanh(ihb_scr[t] + hh)
        out_ref[t] = h_new  # single (lane-dense) store per step
        return h_new

    h0 = jnp.zeros((B, Hp), jnp.float32)
    jax.lax.fori_loop(0, T, step, h0, unroll=True)


def encoder_forward(x, w_ih, w_hh, b_ih, b_hh):
    """x: (T, B, 1) f32. Returns (outputs (T,B,H), hidden (1,B,H))."""
    T, B, _ = x.shape
    H = w_hh.shape[0]
    Hp = ((H + 127) // 128) * 128  # lane-dense padded hidden size

    x = x.astype(jnp.float32)
    # Zero-padding preserves the recurrence exactly: padded lanes see
    # 0 input, 0 bias and 0 columns of W_hh^T, so they stay tanh(0) = 0.
    wih_row = jnp.zeros((1, Hp), jnp.float32).at[:, :H].set(
        w_ih.reshape(1, H).astype(jnp.float32))
    whhT = jnp.zeros((Hp, Hp), jnp.float32).at[:H, :H].set(
        w_hh.T.astype(jnp.float32))
    bias = jnp.zeros((1, Hp), jnp.float32).at[:, :H].set(
        (b_ih + b_hh).reshape(1, H).astype(jnp.float32))

    out_padded = pl.pallas_call(
        rnn_kernel,
        out_shape=jax.ShapeDtypeStruct((T, B, Hp), jnp.float32),
        in_specs=[
            pl.BlockSpec(memory_space=pltpu.MemorySpace.VMEM),  # x (T,B,1)
            pl.BlockSpec(memory_space=pltpu.MemorySpace.VMEM),  # W_ih row
            pl.BlockSpec(memory_space=pltpu.MemorySpace.VMEM),  # W_hh^T
            pl.BlockSpec(memory_space=pltpu.MemorySpace.VMEM),  # bias
        ],
        out_specs=pl.BlockSpec(memory_space=pltpu.MemorySpace.VMEM),
        scratch_shapes=[pltpu.VMEM((T, B, Hp), jnp.float32)],   # hoisted x*W_ih+b
    )(x, wih_row, whhT, bias)

    outputs = out_padded[:, :, :H]      # strip lane padding
    hidden = outputs[-1][None]          # final hidden of the single-layer RNN
    return outputs, hidden


def encoder_forward_ref(x, w_ih, w_hh, b_ih, b_hh):
    """Pure-JAX reference (lax.scan), mirrors torch.nn.RNN exactly."""
    T, B, _ = x.shape
    H = w_hh.shape[0]
    h0 = jnp.zeros((B, H), jnp.float32)

    def step(h, x_t):
        h_new = jnp.tanh(x_t @ w_ih.T + b_ih + h @ w_hh.T + b_hh)
        return h_new, h_new

    h_last, outs = jax.lax.scan(step, h0, x)
    return outs, h_last[None]


if __name__ == "__main__":
    seq_len, batch, hidden_size = 8, 2, 32

    key = jax.random.PRNGKey(0)
    k_x, k_wih, k_whh, k_bih, k_bhh = jax.random.split(key, 5)

    # torch.nn.RNN init: U(-1/sqrt(H), 1/sqrt(H))
    bound = 1.0 / jnp.sqrt(hidden_size)
    w_ih = jax.random.uniform(k_wih, (hidden_size, 1), jnp.float32, -bound, bound)
    w_hh = jax.random.uniform(k_whh, (hidden_size, hidden_size), jnp.float32, -bound, bound)
    b_ih = jax.random.uniform(k_bih, (hidden_size,), jnp.float32, -bound, bound)
    b_hh = jax.random.uniform(k_bhh, (hidden_size,), jnp.float32, -bound, bound)

    x = jax.random.normal(k_x, (seq_len, batch, 1), jnp.float32)

    outputs, hidden = encoder_forward(x, w_ih, w_hh, b_ih, b_hh)
    jax.block_until_ready((outputs, hidden))

    ref_out, ref_hid = encoder_forward_ref(x, w_ih, w_hh, b_ih, b_hh)
    assert outputs.shape == (seq_len, batch, hidden_size)
    assert hidden.shape == (1, batch, hidden_size)
    assert jnp.allclose(outputs, ref_out, atol=1e-5, rtol=1e-5)
    assert jnp.allclose(hidden, ref_hid, atol=1e-5, rtol=1e-5)

    print("KERNEL_OK")
</pallas_src>

<mosaic_0001>
module attributes {stable_mosaic.version = 11 : i64} {
  func.func @rnn_kernel(%arg0: memref<8x2x1xf32, #tpu.memory_space<vmem>>, %arg1: memref<1x128xf32, #tpu.memory_space<vmem>>, %arg2: memref<128x128xf32, #tpu.memory_space<vmem>>, %arg3: memref<1x128xf32, #tpu.memory_space<vmem>>, %arg4: memref<8x2x128xf32, #tpu.memory_space<vmem>>, %arg5: memref<8x2x128xf32, #tpu.memory_space<vmem>>) attributes {dimension_semantics = [], scalar_prefetch = 0 : i64, scratch_operands = 1 : i64, tpu.core_type = #tpu.core_type<tc>} {
    %c0 = arith.constant 0 : index
    %c0_0 = arith.constant 0 : index
    %c0_1 = arith.constant 0 : index
    %0 = vector.load %arg0[%c0, %c0_0, %c0_1] : memref<8x2x1xf32, #tpu.memory_space<vmem>>, vector<8x2x1xf32>
    %c0_2 = arith.constant 0 : index
    %c0_3 = arith.constant 0 : index
    %1 = vector.load %arg1[%c0_2, %c0_3] : memref<1x128xf32, #tpu.memory_space<vmem>>, vector<1x128xf32>
    %2 = vector.shape_cast %1 : vector<1x128xf32> to vector<1x1x128xf32>
    %3 = vector.broadcast %0 : vector<8x2x1xf32> to vector<8x2x128xf32>
    %4 = vector.broadcast %2 : vector<1x1x128xf32> to vector<8x2x128xf32>
    %5 = arith.mulf %3, %4 : vector<8x2x128xf32>
    %c0_4 = arith.constant 0 : index
    %c0_5 = arith.constant 0 : index
    %6 = vector.load %arg3[%c0_4, %c0_5] : memref<1x128xf32, #tpu.memory_space<vmem>>, vector<1x128xf32>
    %7 = vector.shape_cast %6 : vector<1x128xf32> to vector<1x1x128xf32>
    %8 = vector.broadcast %7 : vector<1x1x128xf32> to vector<8x2x128xf32>
    %9 = arith.addf %5, %8 : vector<8x2x128xf32>
    %c0_6 = arith.constant 0 : index
    %c0_7 = arith.constant 0 : index
    %c0_8 = arith.constant 0 : index
    %10 = vector.load %arg5[%c0_6, %c0_7, %c0_8] : memref<8x2x128xf32, #tpu.memory_space<vmem>>, vector<8x2x128xf32>
    tpu.vector_store %arg5[%c0_6, %c0_7, %c0_8], %9 {strides = array<i32>} : memref<8x2x128xf32, #tpu.memory_space<vmem>>, vector<8x2x128xf32>,
    %c0_9 = arith.constant 0 : index
    %c0_10 = arith.constant 0 : index
    %11 = vector.load %arg2[%c0_9, %c0_10] : memref<128x128xf32, #tpu.memory_space<vmem>>, vector<128x128xf32>
    %cst = arith.constant 0.000000e+00 : f32
    %12 = vector.broadcast %cst : f32 to vector<2x128xf32>
    %c0_i32 = arith.constant 0 : i32
    %cst_11 = arith.constant dense<0.000000e+00> : vector<2x128xf32>
    %13 = tpu.matmul %12, %11, %cst_11 {dimension_numbers = #tpu.dot_dimension_numbers<[1], [0], [0], [1], [0, 0, 1, 1], [], []>} : vector<2x128xf32>, vector<128x128xf32>, vector<2x128xf32> -> vector<2x128xf32>
    %14 = arith.index_cast %c0_i32 : i32 to index
    %c0_12 = arith.constant 0 : index
    %c0_13 = arith.constant 0 : index
    %15 = vector.load %arg5[%14, %c0_12, %c0_13] : memref<8x2x128xf32, #tpu.memory_space<vmem>>, vector<1x2x128xf32>
    %16 = vector.shape_cast %15 : vector<1x2x128xf32> to vector<2x128xf32>
    %17 = arith.addf %16, %13 : vector<2x128xf32>
    %18 = math.tanh %17 : vector<2x128xf32>
    %19 = arith.index_cast %c0_i32 : i32 to index
    %c0_14 = arith.constant 0 : index
    %c0_15 = arith.constant 0 : index
    %20 = vector.load %arg4[%19, %c0_14, %c0_15] : memref<8x2x128xf32, #tpu.memory_space<vmem>>, vector<1x2x128xf32>
    %21 = vector.shape_cast %20 : vector<1x2x128xf32> to vector<2x128xf32>
    %22 = vector.shape_cast %18 : vector<2x128xf32> to vector<1x2x128xf32>
    tpu.vector_store %arg4[%19, %c0_14, %c0_15], %22 {strides = array<i32>} : memref<8x2x128xf32, #tpu.memory_space<vmem>>, vector<1x2x128xf32>,
    %c1_i32 = arith.constant 1 : i32
    %cst_16 = arith.constant dense<0.000000e+00> : vector<2x128xf32>
    %23 = tpu.matmul %18, %11, %cst_16 {dimension_numbers = #tpu.dot_dimension_numbers<[1], [0], [0], [1], [0, 0, 1, 1], [], []>} : vector<2x128xf32>, vector<128x128xf32>, vector<2x128xf32> -> vector<2x128xf32>
    %24 = arith.index_cast %c1_i32 : i32 to index
    %c0_17 = arith.constant 0 : index
    %c0_18 = arith.constant 0 : index
    %25 = vector.load %arg5[%24, %c0_17, %c0_18] : memref<8x2x128xf32, #tpu.memory_space<vmem>>, vector<1x2x128xf32>
    %26 = vector.shape_cast %25 : vector<1x2x128xf32> to vector<2x128xf32>
    %27 = arith.addf %26, %23 : vector<2x128xf32>
    %28 = math.tanh %27 : vector<2x128xf32>
    %29 = arith.index_cast %c1_i32 : i32 to index
    %c0_19 = arith.constant 0 : index
    %c0_20 = arith.constant 0 : index
    %30 = vector.load %arg4[%29, %c0_19, %c0_20] : memref<8x2x128xf32, #tpu.memory_space<vmem>>, vector<1x2x128xf32>
    %31 = vector.shape_cast %30 : vector<1x2x128xf32> to vector<2x128xf32>
    %32 = vector.shape_cast %28 : vector<2x128xf32> to vector<1x2x128xf32>
    tpu.vector_store %arg4[%29, %c0_19, %c0_20], %32 {strides = array<i32>} : memref<8x2x128xf32, #tpu.memory_space<vmem>>, vector<1x2x128xf32>,
    %c2_i32 = arith.constant 2 : i32
    %cst_21 = arith.constant dense<0.000000e+00> : vector<2x128xf32>
    %33 = tpu.matmul %28, %11, %cst_21 {dimension_numbers = #tpu.dot_dimension_numbers<[1], [0], [0], [1], [0, 0, 1, 1], [], []>} : vector<2x128xf32>, vector<128x128xf32>, vector<2x128xf32> -> vector<2x128xf32>
    %34 = arith.index_cast %c2_i32 : i32 to index
    %c0_22 = arith.constant 0 : index
    %c0_23 = arith.constant 0 : index
    %35 = vector.load %arg5[%34, %c0_22, %c0_23] : memref<8x2x128xf32, #tpu.memory_space<vmem>>, vector<1x2x128xf32>
    %36 = vector.shape_cast %35 : vector<1x2x128xf32> to vector<2x128xf32>
    %37 = arith.addf %36, %33 : vector<2x128xf32>
    %38 = math.tanh %37 : vector<2x128xf32>
    %39 = arith.index_cast %c2_i32 : i32 to index
    %c0_24 = arith.constant 0 : index
    %c0_25 = arith.constant 0 : index
    %40 = vector.load %arg4[%39, %c0_24, %c0_25] : memref<8x2x128xf32, #tpu.memory_space<vmem>>, vector<1x2x128xf32>
    %41 = vector.shape_cast %40 : vector<1x2x128xf32> to vector<2x128xf32>
    %42 = vector.shape_cast %38 : vector<2x128xf32> to vector<1x2x128xf32>
    tpu.vector_store %arg4[%39, %c0_24, %c0_25], %42 {strides = array<i32>} : memref<8x2x128xf32, #tpu.memory_space<vmem>>, vector<1x2x128xf32>,
    %c3_i32 = arith.constant 3 : i32
    %cst_26 = arith.constant dense<0.000000e+00> : vector<2x128xf32>
    %43 = tpu.matmul %38, %11, %cst_26 {dimension_numbers = #tpu.dot_dimension_numbers<[1], [0], [0], [1], [0, 0, 1, 1], [], []>} : vector<2x128xf32>, vector<128x128xf32>, vector<2x128xf32> -> vector<2x128xf32>
    %44 = arith.index_cast %c3_i32 : i32 to index
    %c0_27 = arith.constant 0 : index
    %c0_28 = arith.constant 0 : index
    %45 = vector.load %arg5[%44, %c0_27, %c0_28] : memref<8x2x128xf32, #tpu.memory_space<vmem>>, vector<1x2x128xf32>
    %46 = vector.shape_cast %45 : vector<1x2x128xf32> to vector<2x128xf32>
    %47 = arith.addf %46, %43 : vector<2x128xf32>
    %48 = math.tanh %47 : vector<2x128xf32>
    %49 = arith.index_cast %c3_i32 : i32 to index
    %c0_29 = arith.constant 0 : index
    %c0_30 = arith.constant 0 : index
    %50 = vector.load %arg4[%49, %c0_29, %c0_30] : memref<8x2x128xf32, #tpu.memory_space<vmem>>, vector<1x2x128xf32>
    %51 = vector.shape_cast %50 : vector<1x2x128xf32> to vector<2x128xf32>
    %52 = vector.shape_cast %48 : vector<2x128xf32> to vector<1x2x128xf32>
    tpu.vector_store %arg4[%49, %c0_29, %c0_30], %52 {strides = array<i32>} : memref<8x2x128xf32, #tpu.memory_space<vmem>>, vector<1x2x128xf32>,
    %c4_i32 = arith.constant 4 : i32
    %cst_31 = arith.constant dense<0.000000e+00> : vector<2x128xf32>
    %53 = tpu.matmul %48, %11, %cst_31 {dimension_numbers = #tpu.dot_dimension_numbers<[1], [0], [0], [1], [0, 0, 1, 1], [], []>} : vector<2x128xf32>, vector<128x128xf32>, vector<2x128xf32> -> vector<2x128xf32>
    %54 = arith.index_cast %c4_i32 : i32 to index
    %c0_32 = arith.constant 0 : index
    %c0_33 = arith.constant 0 : index
    %55 = vector.load %arg5[%54, %c0_32, %c0_33] : memref<8x2x128xf32, #tpu.memory_space<vmem>>, vector<1x2x128xf32>
    %56 = vector.shape_cast %55 : vector<1x2x128xf32> to vector<2x128xf32>
    %57 = arith.addf %56, %53 : vector<2x128xf32>
    %58 = math.tanh %57 : vector<2x128xf32>
    %59 = arith.index_cast %c4_i32 : i32 to index
    %c0_34 = arith.constant 0 : index
    %c0_35 = arith.constant 0 : index
    %60 = vector.load %arg4[%59, %c0_34, %c0_35] : memref<8x2x128xf32, #tpu.memory_space<vmem>>, vector<1x2x128xf32>
    %61 = vector.shape_cast %60 : vector<1x2x128xf32> to vector<2x128xf32>
    %62 = vector.shape_cast %58 : vector<2x128xf32> to vector<1x2x128xf32>
    tpu.vector_store %arg4[%59, %c0_34, %c0_35], %62 {strides = array<i32>} : memref<8x2x128xf32, #tpu.memory_space<vmem>>, vector<1x2x128xf32>,
    %c5_i32 = arith.constant 5 : i32
    %cst_36 = arith.constant dense<0.000000e+00> : vector<2x128xf32>
    %63 = tpu.matmul %58, %11, %cst_36 {dimension_numbers = #tpu.dot_dimension_numbers<[1], [0], [0], [1], [0, 0, 1, 1], [], []>} : vector<2x128xf32>, vector<128x128xf32>, vector<2x128xf32> -> vector<2x128xf32>
    %64 = arith.index_cast %c5_i32 : i32 to index
    %c0_37 = arith.constant 0 : index
    %c0_38 = arith.constant 0 : index
    %65 = vector.load %arg5[%64, %c0_37, %c0_38] : memref<8x2x128xf32, #tpu.memory_space<vmem>>, vector<1x2x128xf32>
    %66 = vector.shape_cast %65 : vector<1x2x128xf32> to vector<2x128xf32>
    %67 = arith.addf %66, %63 : vector<2x128xf32>
    %68 = math.tanh %67 : vector<2x128xf32>
    %69 = arith.index_cast %c5_i32 : i32 to index
    %c0_39 = arith.constant 0 : index
    %c0_40 = arith.constant 0 : index
    %70 = vector.load %arg4[%69, %c0_39, %c0_40] : memref<8x2x128xf32, #tpu.memory_space<vmem>>, vector<1x2x128xf32>
    %71 = vector.shape_cast %70 : vector<1x2x128xf32> to vector<2x128xf32>
    %72 = vector.shape_cast %68 : vector<2x128xf32> to vector<1x2x128xf32>
    tpu.vector_store %arg4[%69, %c0_39, %c0_40], %72 {strides = array<i32>} : memref<8x2x128xf32, #tpu.memory_space<vmem>>, vector<1x2x128xf32>,
    %c6_i32 = arith.constant 6 : i32
    %cst_41 = arith.constant dense<0.000000e+00> : vector<2x128xf32>
    %73 = tpu.matmul %68, %11, %cst_41 {dimension_numbers = #tpu.dot_dimension_numbers<[1], [0], [0], [1], [0, 0, 1, 1], [], []>} : vector<2x128xf32>, vector<128x128xf32>, vector<2x128xf32> -> vector<2x128xf32>
    %74 = arith.index_cast %c6_i32 : i32 to index
    %c0_42 = arith.constant 0 : index
    %c0_43 = arith.constant 0 : index
    %75 = vector.load %arg5[%74, %c0_42, %c0_43] : memref<8x2x128xf32, #tpu.memory_space<vmem>>, vector<1x2x128xf32>
    %76 = vector.shape_cast %75 : vector<1x2x128xf32> to vector<2x128xf32>
    %77 = arith.addf %76, %73 : vector<2x128xf32>
    %78 = math.tanh %77 : vector<2x128xf32>
    %79 = arith.index_cast %c6_i32 : i32 to index
    %c0_44 = arith.constant 0 : index
    %c0_45 = arith.constant 0 : index
    %80 = vector.load %arg4[%79, %c0_44, %c0_45] : memref<8x2x128xf32, #tpu.memory_space<vmem>>, vector<1x2x128xf32>
    %81 = vector.shape_cast %80 : vector<1x2x128xf32> to vector<2x128xf32>
    %82 = vector.shape_cast %78 : vector<2x128xf32> to vector<1x2x128xf32>
    tpu.vector_store %arg4[%79, %c0_44, %c0_45], %82 {strides = array<i32>} : memref<8x2x128xf32, #tpu.memory_space<vmem>>, vector<1x2x128xf32>,
    %c7_i32 = arith.constant 7 : i32
    %cst_46 = arith.constant dense<0.000000e+00> : vector<2x128xf32>
    %83 = tpu.matmul %78, %11, %cst_46 {dimension_numbers = #tpu.dot_dimension_numbers<[1], [0], [0], [1], [0, 0, 1, 1], [], []>} : vector<2x128xf32>, vector<128x128xf32>, vector<2x128xf32> -> vector<2x128xf32>
    %84 = arith.index_cast %c7_i32 : i32 to index
    %c0_47 = arith.constant 0 : index
    %c0_48 = arith.constant 0 : index
    %85 = vector.load %arg5[%84, %c0_47, %c0_48] : memref<8x2x128xf32, #tpu.memory_space<vmem>>, vector<1x2x128xf32>
    %86 = vector.shape_cast %85 : vector<1x2x128xf32> to vector<2x128xf32>
    %87 = arith.addf %86, %83 : vector<2x128xf32>
    %88 = math.tanh %87 : vector<2x128xf32>
    %89 = arith.index_cast %c7_i32 : i32 to index
    %c0_49 = arith.constant 0 : index
    %c0_50 = arith.constant 0 : index
    %90 = vector.load %arg4[%89, %c0_49, %c0_50] : memref<8x2x128xf32, #tpu.memory_space<vmem>>, vector<1x2x128xf32>
    %91 = vector.shape_cast %90 : vector<1x2x128xf32> to vector<2x128xf32>
    %92 = vector.shape_cast %88 : vector<2x128xf32> to vector<1x2x128xf32>
    tpu.vector_store %arg4[%89, %c0_49, %c0_50], %92 {strides = array<i32>} : memref<8x2x128xf32, #tpu.memory_space<vmem>>, vector<1x2x128xf32>,
    %c8_i32 = arith.constant 8 : i32
    return
  }
}

</mosaic_0001>

<llo_original>
// kernel: tpu_custom_call.1
$region0: #{tpu_custom_call.1}
  #allocation0 [shape = 'u32[]', space=smem, size = 0x4, offset = 0x4, fixed_abs, tag = 'smem constant byte address 0x4 - core index']
  #allocation1 [shape = 'u32[144,128]{1,0:T(1,128)}', space=vmem, size = 0x12000, scoped, tag = 'internal scratch']
  #allocation2 [shape = 'f32[8,2,128]{2,1,0:T(2,128)}', space=vmem, size = 0x2000, scoped, tag = 'scratch operand']
  %s0 = inlined_call_operand.vmem [shape: f32[8,2,1], index: 0, kind: input, shape index: {}]
  %s1 = inlined_call_operand.vmem [shape: f32[1,128], index: 1, kind: input, shape index: {}]
  %s2 = inlined_call_operand.hbm [shape: f32[128,128], index: 2, kind: input, shape index: {}]
  %s3 = inlined_call_operand.vmem [shape: f32[1,128], index: 3, kind: input, shape index: {}]
  %s4 = inlined_call_operand.hbm [shape: f32[8,2,128], index: 4, kind: output, shape index: {}]
  %s5 = sld [smem:[#allocation0]]
  $region30: #{tpu_custom_call.1} parent=0
    _
  %s7 = ssub.s32 1, %s5
  %s8 = scalar_select 0, %s7, %s5
  $region1: #{tpu_custom_call.1} parent=0
    #allocation3 [shape = 'u8[65536]{0}', space=vmem, size = 0x10000, scoped, tag = 'input window, operand 2, single buffered']
    #allocation4 [shape = 's32[1]{0}', space=sflag, size = 0x4, scoped, tag = 'scoped memory for tpu_custom_call.1']
    #allocation5 [shape = 's32[1]{0}', space=sflag, size = 0x4, scoped, tag = 'scoped memory for tpu_custom_call.1']
    #allocation6 [shape = 'u8[8192]{0}', space=vmem, size = 0x2000, scoped, tag = 'output window, operand 0, single buffered']
    %9 = vsyncpa [#allocation4], 0
    %10 = vsyncpa [#allocation5], 0
    // Predicated region
    $region2: #{tpu_custom_call.1} parent=1 // pred_check
      _
    $region3: #{tpu_custom_call.1} parent=1 // pred_check_branch
      %12 = sbr.rel (0) target = $region5
    $region4: #{tpu_custom_call.1} parent=1 // pred_region
      _
    $region5: #{tpu_custom_call.1} parent=1 // pred_fallthru
      _
    // Predicated region
    $region6: #{tpu_custom_call.1} parent=1 // pred_check
      _
    $region7: #{tpu_custom_call.1} parent=1 // pred_check_branch
      %14 = sbr.rel (0) target = $region9
    $region8: #{tpu_custom_call.1} parent=1 // pred_region
      _
    $region9: #{tpu_custom_call.1} parent=1 // pred_fallthru
      _
    // Predicated region
    $region10: #{tpu_custom_call.1} parent=1 // pred_check
      _
    $region11: #{tpu_custom_call.1} parent=1 // pred_check_branch
      %16 = sbr.rel (0) target = $region13
    $region12: #{tpu_custom_call.1} parent=1 // pred_region
      %s18 = ssub.s32 2048, 2048
      %19 = vsyncadd [#allocation4], %s18
      %s20 = sshll.u32 [#allocation3], 4
      %s21 = int_to_ptr.vmem [resolvable:$true] %s20
      %26 = dma.hbm_to_vmem [thread:$0]  %s2, 2048, %s21, [#allocation4], 128, 128, 8
    $region13: #{tpu_custom_call.1} parent=1 // pred_fallthru
      _
    // Predicated region
    $region14: #{tpu_custom_call.1} parent=1 // pred_check
      _
    $region15: #{tpu_custom_call.1} parent=1 // pred_check_branch
      %28 = sbr.rel (0) target = $region17
    $region16: #{tpu_custom_call.1} parent=1 // pred_region
      _
    $region17: #{tpu_custom_call.1} parent=1 // pred_fallthru
      _
    // Predicated region
    $region18: #{tpu_custom_call.1} parent=1 // pred_check
      _
    $region19: #{tpu_custom_call.1} parent=1 // pred_check_branch
      %30 = sbr.rel (0) target = $region21
    $region20: #{tpu_custom_call.1} parent=1 // pred_region
      %31 = dma.done [#allocation4], 2048
    $region21: #{tpu_custom_call.1} parent=1 // pred_fallthru
      _
    %v32 = vld [vmem:[%s0] sm:$0x3]
    %v33 = vld [vmem:[%s0 + $0x2] sm:$0x3]
    %v34 = vld [vmem:[%s0 + $0x4] sm:$0x3]
    %v35 = vld [vmem:[%s0 + $0x6] sm:$0x3]
    %v36 = vld [vmem:[%s0 + $0x8] sm:$0x3]
    %v37 = vld [vmem:[%s0 + $0xa] sm:$0x3]
    %v38 = vld [vmem:[%s0 + $0xc] sm:$0x3]
    %v39 = vld [vmem:[%s0 + $0xe] sm:$0x3]
    %v40 = vld [vmem:[%s1] sm:$0x1]
    %42 = vset.pattern.permute.xlu0 0
    %43 = vperm.xlu0 %42, %v32
    %v44 = vpop.permute.xlu0 %43
    %47 = vset.pattern.permute.xlu0 0
    %48 = vperm.xlu0 %47, %v33
    %v49 = vpop.permute.xlu0 %48
    %52 = vset.pattern.permute.xlu0 0
    %53 = vperm.xlu0 %52, %v34
    %v54 = vpop.permute.xlu0 %53
    %57 = vset.pattern.permute.xlu0 0
    %58 = vperm.xlu0 %57, %v35
    %v59 = vpop.permute.xlu0 %58
    %62 = vset.pattern.permute.xlu0 0
    %63 = vperm.xlu0 %62, %v36
    %v64 = vpop.permute.xlu0 %63
    %67 = vset.pattern.permute.xlu0 0
    %68 = vperm.xlu0 %67, %v37
    %v69 = vpop.permute.xlu0 %68
    %72 = vset.pattern.permute.xlu0 0
    %73 = vperm.xlu0 %72, %v38
    %v74 = vpop.permute.xlu0 %73
    %77 = vset.pattern.permute.xlu0 0
    %78 = vperm.xlu0 %77, %v39
    %v79 = vpop.permute.xlu0 %78
    %v82 = vlaneseq
    %v83 = vshrl.u32 %v82, 7
    %v84 = vsub.s32 0, %v83
    %v85 = vrot.slane %v40, %v84
    %v87 = vmul.f32 %v44, %v85
    %v88 = vmul.f32 %v49, %v85
    %v89 = vmul.f32 %v54, %v85
    %v90 = vmul.f32 %v59, %v85
    %v91 = vmul.f32 %v64, %v85
    %v92 = vmul.f32 %v69, %v85
    %v93 = vmul.f32 %v74, %v85
    %v94 = vmul.f32 %v79, %v85
    %v95 = vld [vmem:[%s3] sm:$0x1]
    %v97 = vlaneseq
    %v98 = vshrl.u32 %v97, 7
    %v99 = vsub.s32 0, %v98
    %v100 = vrot.slane %v95, %v99
    %v102 = vadd.f32 %v87, %v100
    %v103 = vadd.f32 %v88, %v100
    %v104 = vadd.f32 %v89, %v100
    %v105 = vadd.f32 %v90, %v100
    %v106 = vadd.f32 %v91, %v100
    %v107 = vadd.f32 %v92, %v100
    %v108 = vadd.f32 %v93, %v100
    %v109 = vadd.f32 %v94, %v100
    %110 = vst [vmem:[#allocation2] sm:$0x3] %v102
    %111 = vst [vmem:[#allocation2 + $0x2] sm:$0x3] %v103
    %112 = vst [vmem:[#allocation2 + $0x4] sm:$0x3] %v104
    %113 = vst [vmem:[#allocation2 + $0x6] sm:$0x3] %v105
    %114 = vst [vmem:[#allocation2 + $0x8] sm:$0x3] %v106
    %115 = vst [vmem:[#allocation2 + $0xa] sm:$0x3] %v107
    %116 = vst [vmem:[#allocation2 + $0xc] sm:$0x3] %v108
    %117 = vst [vmem:[#allocation2 + $0xe] sm:$0x3] %v109
    %v118 = vld [vmem:[#allocation3] sm:$0xff]
    %v119 = vld [vmem:[#allocation3 + $0x8] sm:$0xff]
    %v120 = vld [vmem:[#allocation3 + $0x10] sm:$0xff]
    %v121 = vld [vmem:[#allocation3 + $0x18] sm:$0xff]
    %v122 = vld [vmem:[#allocation3 + $0x20] sm:$0xff]
    %v123 = vld [vmem:[#allocation3 + $0x28] sm:$0xff]
    %v124 = vld [vmem:[#allocation3 + $0x30] sm:$0xff]
    %v125 = vld [vmem:[#allocation3 + $0x38] sm:$0xff]
    %v126 = vld [vmem:[#allocation3 + $0x40] sm:$0xff]
    %v127 = vld [vmem:[#allocation3 + $0x48] sm:$0xff]
    %v128 = vld [vmem:[#allocation3 + $0x50] sm:$0xff]
    %v129 = vld [vmem:[#allocation3 + $0x58] sm:$0xff]
    %v130 = vld [vmem:[#allocation3 + $0x60] sm:$0xff]
    %v131 = vld [vmem:[#allocation3 + $0x68] sm:$0xff]
    %v132 = vld [vmem:[#allocation3 + $0x70] sm:$0xff]
    %v133 = vld [vmem:[#allocation3 + $0x78] sm:$0xff]
    %134 = vmatprep.subr.mxu0 0.0
    %135 = vmatpush1.msra.mxu0 %v118
    %136 = vmatprep.subr.mxu0 0.0
    %137 = vmatpush1.msra.mxu0 %v119
    %138 = vmatprep.subr.mxu0 0.0
    %139 = vmatpush1.msra.mxu0 %v120
    %140 = vmatprep.subr.mxu0 0.0
    %141 = vmatpush1.msra.mxu0 %v121
    %142 = vmatprep.subr.mxu0 0.0
    %143 = vmatpush1.msra.mxu0 %v122
    %144 = vmatprep.subr.mxu0 0.0
    %145 = vmatpush1.msra.mxu0 %v123
    %146 = vmatprep.subr.mxu0 0.0
    %147 = vmatpush1.msra.mxu0 %v124
    %148 = vmatprep.subr.mxu0 0.0
    %149 = vmatpush1.msra.mxu0 %v125
    %150 = vmatprep.subr.mxu0 0.0
    %151 = vmatpush1.msra.mxu0 %v126
    %152 = vmatprep.subr.mxu0 0.0
    %153 = vmatpush1.msra.mxu0 %v127
    %154 = vmatprep.subr.mxu0 0.0
    %155 = vmatpush1.msra.mxu0 %v128
    %156 = vmatprep.subr.mxu0 0.0
    %157 = vmatpush1.msra.mxu0 %v129
    %158 = vmatprep.subr.mxu0 0.0
    %159 = vmatpush1.msra.mxu0 %v130
    %160 = vmatprep.subr.mxu0 0.0
    %161 = vmatpush1.msra.mxu0 %v131
    %162 = vmatprep.subr.mxu0 0.0
    %163 = vmatpush1.msra.mxu0 %v132
    %164 = vmatprep.subr.mxu0 0.0
    %165 = vmatpush1.msra.mxu0 %v133
    %166 = vmatprep.subr.mxu0 0.0
    %167 = vmatpush1.msra.mxu0 0.0
    %168 = vmatprep.subr.mxu0 0.0
    %169 = vmatpush1.msra.mxu0 0.0
    %170 = vmatprep.subr.mxu0 0.0
    %171 = vmatpush1.msra.mxu0 0.0
    %172 = vmatprep.subr.mxu0 0.0
    %173 = vmatpush1.msra.mxu0 0.0
    %174 = vmatprep.subr.mxu0 0.0
    %175 = vmatpush1.msra.mxu0 0.0
    %176 = vmatprep.subr.mxu0 0.0
    %177 = vmatpush1.msra.mxu0 0.0
    %178 = vmatprep.subr.mxu0 0.0
    %179 = vmatpush1.msra.mxu0 0.0
    %180 = vmatprep.subr.mxu0 0.0
    %181 = vmatpush1.msra.mxu0 0.0
    %182 = vmatprep.subr.mxu0 0.0
    %183 = vmatpush1.msra.mxu0 0.0
    %184 = vmatprep.subr.mxu0 0.0
    %185 = vmatpush1.msra.mxu0 0.0
    %186 = vmatprep.subr.mxu0 0.0
    %187 = vmatpush1.msra.mxu0 0.0
    %188 = vmatprep.subr.mxu0 0.0
    %189 = vmatpush1.msra.mxu0 0.0
    %190 = vmatprep.subr.mxu0 0.0
    %191 = vmatpush1.msra.mxu0 0.0
    %192 = vmatprep.subr.mxu0 0.0
    %193 = vmatpush1.msra.mxu0 0.0
    %194 = vmatprep.subr.mxu0 0.0
    %195 = vmatpush1.msra.mxu0 0.0
    %196 = vmatprep.subr.mxu0 0.0
    %197 = vmatpush1.msra.mxu0 0.0
    %198 = vmatprep.mubr.f32.mxu0 0.0
    %199 = vmatmul.mubr.f32.gmra.mrb[0].mxu0 0.0
    %v200 = vpop.f32.mrb[0].mxu0
    %v201 = vadd.f32 0.0, %v200
    %v202 = vpop.f32.mrb[0].mxu0
    %203 = vdwg.mxu0
    %v204 = vld [vmem:[#allocation2] sm:$0x3]
    %v205 = vadd.f32 %v204, %v201
    %v206 = vtanh.pop %v205
    %207 = vst [vmem:[#allocation6] sm:$0x3] %v206
    %208 = vmatprep.subr.mxu0 0.0
    %209 = vmatpush1.msra.mxu0 %v118
    %210 = vmatprep.subr.mxu0 0.0
    %211 = vmatpush1.msra.mxu0 %v119
    %212 = vmatprep.subr.mxu0 0.0
    %213 = vmatpush1.msra.mxu0 %v120
    %214 = vmatprep.subr.mxu0 0.0
    %215 = vmatpush1.msra.mxu0 %v121
    %216 = vmatprep.subr.mxu0 0.0
    %217 = vmatpush1.msra.mxu0 %v122
    %218 = vmatprep.subr.mxu0 0.0
    %219 = vmatpush1.msra.mxu0 %v123
    %220 = vmatprep.subr.mxu0 0.0
    %221 = vmatpush1.msra.mxu0 %v124
    %222 = vmatprep.subr.mxu0 0.0
    %223 = vmatpush1.msra.mxu0 %v125
    %224 = vmatprep.subr.mxu0 0.0
    %225 = vmatpush1.msra.mxu0 %v126
    %226 = vmatprep.subr.mxu0 0.0
    %227 = vmatpush1.msra.mxu0 %v127
    %228 = vmatprep.subr.mxu0 0.0
    %229 = vmatpush1.msra.mxu0 %v128
    %230 = vmatprep.subr.mxu0 0.0
    %231 = vmatpush1.msra.mxu0 %v129
    %232 = vmatprep.subr.mxu0 0.0
    %233 = vmatpush1.msra.mxu0 %v130
    %234 = vmatprep.subr.mxu0 0.0
    %235 = vmatpush1.msra.mxu0 %v131
    %236 = vmatprep.subr.mxu0 0.0
    %237 = vmatpush1.msra.mxu0 %v132
    %238 = vmatprep.subr.mxu0 0.0
    %239 = vmatpush1.msra.mxu0 %v133
    %240 = vmatprep.subr.mxu0 0.0
    %241 = vmatpush1.msra.mxu0 0.0
    %242 = vmatprep.subr.mxu0 0.0
    %243 = vmatpush1.msra.mxu0 0.0
    %244 = vmatprep.subr.mxu0 0.0
    %245 = vmatpush1.msra.mxu0 0.0
    %246 = vmatprep.subr.mxu0 0.0
    %247 = vmatpush1.msra.mxu0 0.0
    %248 = vmatprep.subr.mxu0 0.0
    %249 = vmatpush1.msra.mxu0 0.0
    %250 = vmatprep.subr.mxu0 0.0
    %251 = vmatpush1.msra.mxu0 0.0
    %252 = vmatprep.subr.mxu0 0.0
    %253 = vmatpush1.msra.mxu0 0.0
    %254 = vmatprep.subr.mxu0 0.0
    %255 = vmatpush1.msra.mxu0 0.0
    %256 = vmatprep.subr.mxu0 0.0
    %257 = vmatpush1.msra.mxu0 0.0
    %258 = vmatprep.subr.mxu0 0.0
    %259 = vmatpush1.msra.mxu0 0.0
    %260 = vmatprep.subr.mxu0 0.0
    %261 = vmatpush1.msra.mxu0 0.0
    %262 = vmatprep.subr.mxu0 0.0
    %263 = vmatpush1.msra.mxu0 0.0
    %264 = vmatprep.subr.mxu0 0.0
    %265 = vmatpush1.msra.mxu0 0.0
    %266 = vmatprep.subr.mxu0 0.0
    %267 = vmatpush1.msra.mxu0 0.0
    %268 = vmatprep.subr.mxu0 0.0
    %269 = vmatpush1.msra.mxu0 0.0
    %270 = vmatprep.subr.mxu0 0.0
    %271 = vmatpush1.msra.mxu0 0.0
    %272 = vmatprep.mubr.f32.mxu0 0.0
    %273 = vmatmul.mubr.f32.gmra.mrb[0].mxu0 %v206
    %v274 = vpop.f32.mrb[0].mxu0
    %v275 = vadd.f32 0.0, %v274
    %v276 = vpop.f32.mrb[0].mxu0
    %277 = vdwg.mxu0
    %s278 = scalar_lea.vmem [#allocation2], 2
    %v279 = vld [vmem:[%s278] sm:$0x3]
    %v280 = vadd.f32 %v279, %v275
    %v281 = vtanh.pop %v280
    %s282 = scalar_lea.vmem [#allocation6], 2
    %283 = vst [vmem:[%s282] sm:$0x3] %v281
    %284 = vmatprep.subr.mxu0 0.0
    %285 = vmatpush1.msra.mxu0 %v118
    %286 = vmatprep.subr.mxu0 0.0
    %287 = vmatpush1.msra.mxu0 %v119
    %288 = vmatprep.subr.mxu0 0.0
    %289 = vmatpush1.msra.mxu0 %v120
    %290 = vmatprep.subr.mxu0 0.0
    %291 = vmatpush1.msra.mxu0 %v121
    %292 = vmatprep.subr.mxu0 0.0
    %293 = vmatpush1.msra.mxu0 %v122
    %294 = vmatprep.subr.mxu0 0.0
    %295 = vmatpush1.msra.mxu0 %v123
    %296 = vmatprep.subr.mxu0 0.0
    %297 = vmatpush1.msra.mxu0 %v124
    %298 = vmatprep.subr.mxu0 0.0
    %299 = vmatpush1.msra.mxu0 %v125
    %300 = vmatprep.subr.mxu0 0.0
    %301 = vmatpush1.msra.mxu0 %v126
    %302 = vmatprep.subr.mxu0 0.0
    %303 = vmatpush1.msra.mxu0 %v127
    %304 = vmatprep.subr.mxu0 0.0
    %305 = vmatpush1.msra.mxu0 %v128
    %306 = vmatprep.subr.mxu0 0.0
    %307 = vmatpush1.msra.mxu0 %v129
    %308 = vmatprep.subr.mxu0 0.0
    %309 = vmatpush1.msra.mxu0 %v130
    %310 = vmatprep.subr.mxu0 0.0
    %311 = vmatpush1.msra.mxu0 %v131
    %312 = vmatprep.subr.mxu0 0.0
    %313 = vmatpush1.msra.mxu0 %v132
    %314 = vmatprep.subr.mxu0 0.0
    %315 = vmatpush1.msra.mxu0 %v133
    %316 = vmatprep.subr.mxu0 0.0
    %317 = vmatpush1.msra.mxu0 0.0
    %318 = vmatprep.subr.mxu0 0.0
    %319 = vmatpush1.msra.mxu0 0.0
    %320 = vmatprep.subr.mxu0 0.0
    %321 = vmatpush1.msra.mxu0 0.0
    %322 = vmatprep.subr.mxu0 0.0
    %323 = vmatpush1.msra.mxu0 0.0
    %324 = vmatprep.subr.mxu0 0.0
    %325 = vmatpush1.msra.mxu0 0.0
    %326 = vmatprep.subr.mxu0 0.0
    %327 = vmatpush1.msra.mxu0 0.0
    %328 = vmatprep.subr.mxu0 0.0
    %329 = vmatpush1.msra.mxu0 0.0
    %330 = vmatprep.subr.mxu0 0.0
    %331 = vmatpush1.msra.mxu0 0.0
    %332 = vmatprep.subr.mxu0 0.0
    %333 = vmatpush1.msra.mxu0 0.0
    %334 = vmatprep.subr.mxu0 0.0
    %335 = vmatpush1.msra.mxu0 0.0
    %336 = vmatprep.subr.mxu0 0.0
    %337 = vmatpush1.msra.mxu0 0.0
    %338 = vmatprep.subr.mxu0 0.0
    %339 = vmatpush1.msra.mxu0 0.0
    %340 = vmatprep.subr.mxu0 0.0
    %341 = vmatpush1.msra.mxu0 0.0
    %342 = vmatprep.subr.mxu0 0.0
    %343 = vmatpush1.msra.mxu0 0.0
    %344 = vmatprep.subr.mxu0 0.0
    %345 = vmatpush1.msra.mxu0 0.0
    %346 = vmatprep.subr.mxu0 0.0
    %347 = vmatpush1.msra.mxu0 0.0
    %348 = vmatprep.mubr.f32.mxu0 0.0
    %349 = vmatmul.mubr.f32.gmra.mrb[0].mxu0 %v281
    %v350 = vpop.f32.mrb[0].mxu0
    %v351 = vadd.f32 0.0, %v350
    %v352 = vpop.f32.mrb[0].mxu0
    %353 = vdwg.mxu0
    %s354 = scalar_lea.vmem [#allocation2], 4
    %v355 = vld [vmem:[%s354] sm:$0x3]
    %v356 = vadd.f32 %v355, %v351
    %v357 = vtanh.pop %v356
    %s358 = scalar_lea.vmem [#allocation6], 4
    %359 = vst [vmem:[%s358] sm:$0x3] %v357
    %360 = vmatprep.subr.mxu0 0.0
    %361 = vmatpush1.msra.mxu0 %v118
    %362 = vmatprep.subr.mxu0 0.0
    %363 = vmatpush1.msra.mxu0 %v119
    %364 = vmatprep.subr.mxu0 0.0
    %365 = vmatpush1.msra.mxu0 %v120
    %366 = vmatprep.subr.mxu0 0.0
    %367 = vmatpush1.msra.mxu0 %v121
    %368 = vmatprep.subr.mxu0 0.0
    %369 = vmatpush1.msra.mxu0 %v122
    %370 = vmatprep.subr.mxu0 0.0
    %371 = vmatpush1.msra.mxu0 %v123
    %372 = vmatprep.subr.mxu0 0.0
    %373 = vmatpush1.msra.mxu0 %v124
    %374 = vmatprep.subr.mxu0 0.0
    %375 = vmatpush1.msra.mxu0 %v125
    %376 = vmatprep.subr.mxu0 0.0
    %377 = vmatpush1.msra.mxu0 %v126
    %378 = vmatprep.subr.mxu0 0.0
    %379 = vmatpush1.msra.mxu0 %v127
    %380 = vmatprep.subr.mxu0 0.0
    %381 = vmatpush1.msra.mxu0 %v128
    %382 = vmatprep.subr.mxu0 0.0
    %383 = vmatpush1.msra.mxu0 %v129
    %384 = vmatprep.subr.mxu0 0.0
    %385 = vmatpush1.msra.mxu0 %v130
    %386 = vmatprep.subr.mxu0 0.0
    %387 = vmatpush1.msra.mxu0 %v131
    %388 = vmatprep.subr.mxu0 0.0
    %389 = vmatpush1.msra.mxu0 %v132
    %390 = vmatprep.subr.mxu0 0.0
    %391 = vmatpush1.msra.mxu0 %v133
    %392 = vmatprep.subr.mxu0 0.0
    %393 = vmatpush1.msra.mxu0 0.0
    %394 = vmatprep.subr.mxu0 0.0
    %395 = vmatpush1.msra.mxu0 0.0
    %396 = vmatprep.subr.mxu0 0.0
    %397 = vmatpush1.msra.mxu0 0.0
    %398 = vmatprep.subr.mxu0 0.0
    %399 = vmatpush1.msra.mxu0 0.0
    %400 = vmatprep.subr.mxu0 0.0
    %401 = vmatpush1.msra.mxu0 0.0
    %402 = vmatprep.subr.mxu0 0.0
    %403 = vmatpush1.msra.mxu0 0.0
    %404 = vmatprep.subr.mxu0 0.0
    %405 = vmatpush1.msra.mxu0 0.0
    %406 = vmatprep.subr.mxu0 0.0
    %407 = vmatpush1.msra.mxu0 0.0
    %408 = vmatprep.subr.mxu0 0.0
    %409 = vmatpush1.msra.mxu0 0.0
    %410 = vmatprep.subr.mxu0 0.0
    %411 = vmatpush1.msra.mxu0 0.0
    %412 = vmatprep.subr.mxu0 0.0
    %413 = vmatpush1.msra.mxu0 0.0
    %414 = vmatprep.subr.mxu0 0.0
    %415 = vmatpush1.msra.mxu0 0.0
    %416 = vmatprep.subr.mxu0 0.0
    %417 = vmatpush1.msra.mxu0 0.0
    %418 = vmatprep.subr.mxu0 0.0
    %419 = vmatpush1.msra.mxu0 0.0
    %420 = vmatprep.subr.mxu0 0.0
    %421 = vmatpush1.msra.mxu0 0.0
    %422 = vmatprep.subr.mxu0 0.0
    %423 = vmatpush1.msra.mxu0 0.0
    %424 = vmatprep.mubr.f32.mxu0 0.0
    %425 = vmatmul.mubr.f32.gmra.mrb[0].mxu0 %v357
    %v426 = vpop.f32.mrb[0].mxu0
    %v427 = vadd.f32 0.0, %v426
    %v428 = vpop.f32.mrb[0].mxu0
    %429 = vdwg.mxu0
    %s430 = scalar_lea.vmem [#allocation2], 6
    %v431 = vld [vmem:[%s430] sm:$0x3]
    %v432 = vadd.f32 %v431, %v427
    %v433 = vtanh.pop %v432
    %s434 = scalar_lea.vmem [#allocation6], 6
    %435 = vst [vmem:[%s434] sm:$0x3] %v433
    %436 = vmatprep.subr.mxu0 0.0
    %437 = vmatpush1.msra.mxu0 %v118
    %438 = vmatprep.subr.mxu0 0.0
    %439 = vmatpush1.msra.mxu0 %v119
    %440 = vmatprep.subr.mxu0 0.0
    %441 = vmatpush1.msra.mxu0 %v120
    %442 = vmatprep.subr.mxu0 0.0
    %443 = vmatpush1.msra.mxu0 %v121
    %444 = vmatprep.subr.mxu0 0.0
    %445 = vmatpush1.msra.mxu0 %v122
    %446 = vmatprep.subr.mxu0 0.0
    %447 = vmatpush1.msra.mxu0 %v123
    %448 = vmatprep.subr.mxu0 0.0
    %449 = vmatpush1.msra.mxu0 %v124
    %450 = vmatprep.subr.mxu0 0.0
    %451 = vmatpush1.msra.mxu0 %v125
    %452 = vmatprep.subr.mxu0 0.0
    %453 = vmatpush1.msra.mxu0 %v126
    %454 = vmatprep.subr.mxu0 0.0
    %455 = vmatpush1.msra.mxu0 %v127
    %456 = vmatprep.subr.mxu0 0.0
    %457 = vmatpush1.msra.mxu0 %v128
    %458 = vmatprep.subr.mxu0 0.0
    %459 = vmatpush1.msra.mxu0 %v129
    %460 = vmatprep.subr.mxu0 0.0
    %461 = vmatpush1.msra.mxu0 %v130
    %462 = vmatprep.subr.mxu0 0.0
    %463 = vmatpush1.msra.mxu0 %v131
    %464 = vmatprep.subr.mxu0 0.0
    %465 = vmatpush1.msra.mxu0 %v132
    %466 = vmatprep.subr.mxu0 0.0
    %467 = vmatpush1.msra.mxu0 %v133
    %468 = vmatprep.subr.mxu0 0.0
    %469 = vmatpush1.msra.mxu0 0.0
    %470 = vmatprep.subr.mxu0 0.0
    %471 = vmatpush1.msra.mxu0 0.0
    %472 = vmatprep.subr.mxu0 0.0
    %473 = vmatpush1.msra.mxu0 0.0
    %474 = vmatprep.subr.mxu0 0.0
    %475 = vmatpush1.msra.mxu0 0.0
    %476 = vmatprep.subr.mxu0 0.0
    %477 = vmatpush1.msra.mxu0 0.0
    %478 = vmatprep.subr.mxu0 0.0
    %479 = vmatpush1.msra.mxu0 0.0
    %480 = vmatprep.subr.mxu0 0.0
    %481 = vmatpush1.msra.mxu0 0.0
    %482 = vmatprep.subr.mxu0 0.0
    %483 = vmatpush1.msra.mxu0 0.0
    %484 = vmatprep.subr.mxu0 0.0
    %485 = vmatpush1.msra.mxu0 0.0
    %486 = vmatprep.subr.mxu0 0.0
    %487 = vmatpush1.msra.mxu0 0.0
    %488 = vmatprep.subr.mxu0 0.0
    %489 = vmatpush1.msra.mxu0 0.0
    %490 = vmatprep.subr.mxu0 0.0
    %491 = vmatpush1.msra.mxu0 0.0
    %492 = vmatprep.subr.mxu0 0.0
    %493 = vmatpush1.msra.mxu0 0.0
    %494 = vmatprep.subr.mxu0 0.0
    %495 = vmatpush1.msra.mxu0 0.0
    %496 = vmatprep.subr.mxu0 0.0
    %497 = vmatpush1.msra.mxu0 0.0
    %498 = vmatprep.subr.mxu0 0.0
    %499 = vmatpush1.msra.mxu0 0.0
    %500 = vmatprep.mubr.f32.mxu0 0.0
    %501 = vmatmul.mubr.f32.gmra.mrb[0].mxu0 %v433
    %v502 = vpop.f32.mrb[0].mxu0
    %v503 = vadd.f32 0.0, %v502
    %v504 = vpop.f32.mrb[0].mxu0
    %505 = vdwg.mxu0
    %s506 = scalar_lea.vmem [#allocation2], 8
    %v507 = vld [vmem:[%s506] sm:$0x3]
    %v508 = vadd.f32 %v507, %v503
    %v509 = vtanh.pop %v508
    %s510 = scalar_lea.vmem [#allocation6], 8
    %511 = vst [vmem:[%s510] sm:$0x3] %v509
    %512 = vmatprep.subr.mxu0 0.0
    %513 = vmatpush1.msra.mxu0 %v118
    %514 = vmatprep.subr.mxu0 0.0
    %515 = vmatpush1.msra.mxu0 %v119
    %516 = vmatprep.subr.mxu0 0.0
    %517 = vmatpush1.msra.mxu0 %v120
    %518 = vmatprep.subr.mxu0 0.0
    %519 = vmatpush1.msra.mxu0 %v121
    %520 = vmatprep.subr.mxu0 0.0
    %521 = vmatpush1.msra.mxu0 %v122
    %522 = vmatprep.subr.mxu0 0.0
    %523 = vmatpush1.msra.mxu0 %v123
    %524 = vmatprep.subr.mxu0 0.0
    %525 = vmatpush1.msra.mxu0 %v124
    %526 = vmatprep.subr.mxu0 0.0
    %527 = vmatpush1.msra.mxu0 %v125
    %528 = vmatprep.subr.mxu0 0.0
    %529 = vmatpush1.msra.mxu0 %v126
    %530 = vmatprep.subr.mxu0 0.0
    %531 = vmatpush1.msra.mxu0 %v127
    %532 = vmatprep.subr.mxu0 0.0
    %533 = vmatpush1.msra.mxu0 %v128
    %534 = vmatprep.subr.mxu0 0.0
    %535 = vmatpush1.msra.mxu0 %v129
    %536 = vmatprep.subr.mxu0 0.0
    %537 = vmatpush1.msra.mxu0 %v130
    %538 = vmatprep.subr.mxu0 0.0
    %539 = vmatpush1.msra.mxu0 %v131
    %540 = vmatprep.subr.mxu0 0.0
    %541 = vmatpush1.msra.mxu0 %v132
    %542 = vmatprep.subr.mxu0 0.0
    %543 = vmatpush1.msra.mxu0 %v133
    %544 = vmatprep.subr.mxu0 0.0
    %545 = vmatpush1.msra.mxu0 0.0
    %546 = vmatprep.subr.mxu0 0.0
    %547 = vmatpush1.msra.mxu0 0.0
    %548 = vmatprep.subr.mxu0 0.0
    %549 = vmatpush1.msra.mxu0 0.0
    %550 = vmatprep.subr.mxu0 0.0
    %551 = vmatpush1.msra.mxu0 0.0
    %552 = vmatprep.subr.mxu0 0.0
    %553 = vmatpush1.msra.mxu0 0.0
    %554 = vmatprep.subr.mxu0 0.0
    %555 = vmatpush1.msra.mxu0 0.0
    %556 = vmatprep.subr.mxu0 0.0
    %557 = vmatpush1.msra.mxu0 0.0
    %558 = vmatprep.subr.mxu0 0.0
    %559 = vmatpush1.msra.mxu0 0.0
    %560 = vmatprep.subr.mxu0 0.0
    %561 = vmatpush1.msra.mxu0 0.0
    %562 = vmatprep.subr.mxu0 0.0
    %563 = vmatpush1.msra.mxu0 0.0
    %564 = vmatprep.subr.mxu0 0.0
    %565 = vmatpush1.msra.mxu0 0.0
    %566 = vmatprep.subr.mxu0 0.0
    %567 = vmatpush1.msra.mxu0 0.0
    %568 = vmatprep.subr.mxu0 0.0
    %569 = vmatpush1.msra.mxu0 0.0
    %570 = vmatprep.subr.mxu0 0.0
    %571 = vmatpush1.msra.mxu0 0.0
    %572 = vmatprep.subr.mxu0 0.0
    %573 = vmatpush1.msra.mxu0 0.0
    %574 = vmatprep.subr.mxu0 0.0
    %575 = vmatpush1.msra.mxu0 0.0
    %576 = vmatprep.mubr.f32.mxu0 0.0
    %577 = vmatmul.mubr.f32.gmra.mrb[0].mxu0 %v509
    %v578 = vpop.f32.mrb[0].mxu0
    %v579 = vadd.f32 0.0, %v578
    %v580 = vpop.f32.mrb[0].mxu0
    %581 = vdwg.mxu0
    %s582 = scalar_lea.vmem [#allocation2], 10
    %v583 = vld [vmem:[%s582] sm:$0x3]
    %v584 = vadd.f32 %v583, %v579
    %v585 = vtanh.pop %v584
    %s586 = scalar_lea.vmem [#allocation6], 10
    %587 = vst [vmem:[%s586] sm:$0x3] %v585
    %588 = vmatprep.subr.mxu0 0.0
    %589 = vmatpush1.msra.mxu0 %v118
    %590 = vmatprep.subr.mxu0 0.0
    %591 = vmatpush1.msra.mxu0 %v119
    %592 = vmatprep.subr.mxu0 0.0
    %593 = vmatpush1.msra.mxu0 %v120
    %594 = vmatprep.subr.mxu0 0.0
    %595 = vmatpush1.msra.mxu0 %v121
    %596 = vmatprep.subr.mxu0 0.0
    %597 = vmatpush1.msra.mxu0 %v122
    %598 = vmatprep.subr.mxu0 0.0
    %599 = vmatpush1.msra.mxu0 %v123
    %600 = vmatprep.subr.mxu0 0.0
    %601 = vmatpush1.msra.mxu0 %v124
    %602 = vmatprep.subr.mxu0 0.0
    %603 = vmatpush1.msra.mxu0 %v125
    %604 = vmatprep.subr.mxu0 0.0
    %605 = vmatpush1.msra.mxu0 %v126
    %606 = vmatprep.subr.mxu0 0.0
    %607 = vmatpush1.msra.mxu0 %v127
    %608 = vmatprep.subr.mxu0 0.0
    %609 = vmatpush1.msra.mxu0 %v128
    %610 = vmatprep.subr.mxu0 0.0
    %611 = vmatpush1.msra.mxu0 %v129
    %612 = vmatprep.subr.mxu0 0.0
    %613 = vmatpush1.msra.mxu0 %v130
    %614 = vmatprep.subr.mxu0 0.0
    %615 = vmatpush1.msra.mxu0 %v131
    %616 = vmatprep.subr.mxu0 0.0
    %617 = vmatpush1.msra.mxu0 %v132
    %618 = vmatprep.subr.mxu0 0.0
    %619 = vmatpush1.msra.mxu0 %v133
    %620 = vmatprep.subr.mxu0 0.0
    %621 = vmatpush1.msra.mxu0 0.0
    %622 = vmatprep.subr.mxu0 0.0
    %623 = vmatpush1.msra.mxu0 0.0
    %624 = vmatprep.subr.mxu0 0.0
    %625 = vmatpush1.msra.mxu0 0.0
    %626 = vmatprep.subr.mxu0 0.0
    %627 = vmatpush1.msra.mxu0 0.0
    %628 = vmatprep.subr.mxu0 0.0
    %629 = vmatpush1.msra.mxu0 0.0
    %630 = vmatprep.subr.mxu0 0.0
    %631 = vmatpush1.msra.mxu0 0.0
    %632 = vmatprep.subr.mxu0 0.0
    %633 = vmatpush1.msra.mxu0 0.0
    %634 = vmatprep.subr.mxu0 0.0
    %635 = vmatpush1.msra.mxu0 0.0
    %636 = vmatprep.subr.mxu0 0.0
    %637 = vmatpush1.msra.mxu0 0.0
    %638 = vmatprep.subr.mxu0 0.0
    %639 = vmatpush1.msra.mxu0 0.0
    %640 = vmatprep.subr.mxu0 0.0
    %641 = vmatpush1.msra.mxu0 0.0
    %642 = vmatprep.subr.mxu0 0.0
    %643 = vmatpush1.msra.mxu0 0.0
    %644 = vmatprep.subr.mxu0 0.0
    %645 = vmatpush1.msra.mxu0 0.0
    %646 = vmatprep.subr.mxu0 0.0
    %647 = vmatpush1.msra.mxu0 0.0
    %648 = vmatprep.subr.mxu0 0.0
    %649 = vmatpush1.msra.mxu0 0.0
    %650 = vmatprep.subr.mxu0 0.0
    %651 = vmatpush1.msra.mxu0 0.0
    %652 = vmatprep.mubr.f32.mxu0 0.0
    %653 = vmatmul.mubr.f32.gmra.mrb[0].mxu0 %v585
    %v654 = vpop.f32.mrb[0].mxu0
    %v655 = vadd.f32 0.0, %v654
    %v656 = vpop.f32.mrb[0].mxu0
    %657 = vdwg.mxu0
    %s658 = scalar_lea.vmem [#allocation2], 12
    %v659 = vld [vmem:[%s658] sm:$0x3]
    %v660 = vadd.f32 %v659, %v655
    %v661 = vtanh.pop %v660
    %s662 = scalar_lea.vmem [#allocation6], 12
    %663 = vst [vmem:[%s662] sm:$0x3] %v661
    %664 = vmatprep.subr.mxu0 0.0
    %665 = vmatpush1.msra.mxu0 %v118
    %666 = vmatprep.subr.mxu0 0.0
    %667 = vmatpush1.msra.mxu0 %v119
    %668 = vmatprep.subr.mxu0 0.0
    %669 = vmatpush1.msra.mxu0 %v120
    %670 = vmatprep.subr.mxu0 0.0
    %671 = vmatpush1.msra.mxu0 %v121
    %672 = vmatprep.subr.mxu0 0.0
    %673 = vmatpush1.msra.mxu0 %v122
    %674 = vmatprep.subr.mxu0 0.0
    %675 = vmatpush1.msra.mxu0 %v123
    %676 = vmatprep.subr.mxu0 0.0
    %677 = vmatpush1.msra.mxu0 %v124
    %678 = vmatprep.subr.mxu0 0.0
    %679 = vmatpush1.msra.mxu0 %v125
    %680 = vmatprep.subr.mxu0 0.0
    %681 = vmatpush1.msra.mxu0 %v126
    %682 = vmatprep.subr.mxu0 0.0
    %683 = vmatpush1.msra.mxu0 %v127
    %684 = vmatprep.subr.mxu0 0.0
    %685 = vmatpush1.msra.mxu0 %v128
    %686 = vmatprep.subr.mxu0 0.0
    %687 = vmatpush1.msra.mxu0 %v129
    %688 = vmatprep.subr.mxu0 0.0
    %689 = vmatpush1.msra.mxu0 %v130
    %690 = vmatprep.subr.mxu0 0.0
    %691 = vmatpush1.msra.mxu0 %v131
    %692 = vmatprep.subr.mxu0 0.0
    %693 = vmatpush1.msra.mxu0 %v132
    %694 = vmatprep.subr.mxu0 0.0
    %695 = vmatpush1.msra.mxu0 %v133
    %696 = vmatprep.subr.mxu0 0.0
    %697 = vmatpush1.msra.mxu0 0.0
    %698 = vmatprep.subr.mxu0 0.0
    %699 = vmatpush1.msra.mxu0 0.0
    %700 = vmatprep.subr.mxu0 0.0
    %701 = vmatpush1.msra.mxu0 0.0
    %702 = vmatprep.subr.mxu0 0.0
    %703 = vmatpush1.msra.mxu0 0.0
    %704 = vmatprep.subr.mxu0 0.0
    %705 = vmatpush1.msra.mxu0 0.0
    %706 = vmatprep.subr.mxu0 0.0
    %707 = vmatpush1.msra.mxu0 0.0
    %708 = vmatprep.subr.mxu0 0.0
    %709 = vmatpush1.msra.mxu0 0.0
    %710 = vmatprep.subr.mxu0 0.0
    %711 = vmatpush1.msra.mxu0 0.0
    %712 = vmatprep.subr.mxu0 0.0
    %713 = vmatpush1.msra.mxu0 0.0
    %714 = vmatprep.subr.mxu0 0.0
    %715 = vmatpush1.msra.mxu0 0.0
    %716 = vmatprep.subr.mxu0 0.0
    %717 = vmatpush1.msra.mxu0 0.0
    %718 = vmatprep.subr.mxu0 0.0
    %719 = vmatpush1.msra.mxu0 0.0
    %720 = vmatprep.subr.mxu0 0.0
    %721 = vmatpush1.msra.mxu0 0.0
    %722 = vmatprep.subr.mxu0 0.0
    %723 = vmatpush1.msra.mxu0 0.0
    %724 = vmatprep.subr.mxu0 0.0
    %725 = vmatpush1.msra.mxu0 0.0
    %726 = vmatprep.subr.mxu0 0.0
    %727 = vmatpush1.msra.mxu0 0.0
    %728 = vmatprep.mubr.f32.mxu0 0.0
    %729 = vmatmul.mubr.f32.gmra.mrb[0].mxu0 %v661
    %v730 = vpop.f32.mrb[0].mxu0
    %v731 = vadd.f32 0.0, %v730
    %v732 = vpop.f32.mrb[0].mxu0
    %733 = vdwg.mxu0
    %s734 = scalar_lea.vmem [#allocation2], 14
    %v735 = vld [vmem:[%s734] sm:$0x3]
    %v736 = vadd.f32 %v735, %v731
    %v737 = vtanh.pop %v736
    %s738 = scalar_lea.vmem [#allocation6], 14
    %739 = vst [vmem:[%s738] sm:$0x3] %v737
    // Predicated region
    $region22: #{tpu_custom_call.1} parent=1 // pred_check
      _
    $region23: #{tpu_custom_call.1} parent=1 // pred_check_branch
      %741 = sbr.rel (0) target = $region25
    $region24: #{tpu_custom_call.1} parent=1 // pred_region
      %s743 = ssub.s32 256, 256
      %744 = vsyncadd [#allocation5], %s743
      %s745 = sshll.u32 [#allocation6], 4
      %s746 = int_to_ptr.vmem [resolvable:$true] %s745
      %751 = dma.vmem_to_hbm [thread:$0]  %s746, 256, %s4, [#allocation5], 32, 32, 2
    $region25: #{tpu_custom_call.1} parent=1 // pred_fallthru
      _
    // Predicated region
    $region26: #{tpu_custom_call.1} parent=1 // pred_check
      _
    $region27: #{tpu_custom_call.1} parent=1 // pred_check_branch
      %753 = sbr.rel (0) target = $region29
    $region28: #{tpu_custom_call.1} parent=1 // pred_region
      %754 = dma.done [#allocation5], 256
    $region29: #{tpu_custom_call.1} parent=1 // pred_fallthru
      _
    %755 = vsyncpa [#allocation4], 1
    %756 = vsyncpa [#allocation5], 1

</llo_original>
